<compile_context>
chip_gen: v7x
topology: tpu7x:2x2x1
jax: 0.10.0
libtpu: 0.0.40
codegen_flags: <defaults>
</compile_context>

<pallas_src>
import jax
import jax.numpy as jnp
from jax.experimental import pallas as pl
from jax.experimental.pallas import tpu as pltpu


def _awb_kernel(x_ref, w1t_ref, b1_ref, wg_ref, b2_ref, o_ref):
    # x_ref : (NB, C, HW)      o_ref : (NB, Cout, HW)
    nb, c, hw = x_ref.shape
    cout = o_ref.shape[1]

    x3 = x_ref[...].astype(jnp.float32)                     # (NB, C, HW)

    # ----- pass 1: global avg / max pooling (lane reductions over HW) --------
    avg_nc = jnp.sum(x3, axis=-1) * (1.0 / hw)               # (NB, C)
    max_nc = jnp.max(x3, axis=-1)                            # (NB, C)

    # ----- fused conv11 (1x1, C->C) on both pooled vectors + sigmoid ---------
    pooled = jnp.concatenate([avg_nc, max_nc], axis=0)       # (2NB, C)
    logits = jnp.dot(pooled, w1t_ref[...],
                     preferred_element_type=jnp.float32) + b1_ref[...]
    att = jax.nn.sigmoid(logits)                             # (2NB, C)
    scale = att[:nb, :] + att[nb:, :] + 1.0                  # 1 + a1 + a2

    # Fold the grouped-conv weight into the per-channel scale:
    #   eff[n, 4g+j] = w2[g, j] * (1 + a1 + a2)[n, 4g+j]
    eff = scale * wg_ref[...]                                # (NB, C)

    # ----- pass 2: out[:, g, :] = b2[g] + sum_j eff[:, 4g+j] * x[:, 4g+j, :] -
    weighted = x3 * eff[:, :, None]                          # one bcast + mul
    b2 = b2_ref[...]                                         # (1, Cout) f32
    # TODO(synk): switch to lax.fori_loop over groups once Cout >= ~32 to
    # bound live ranges; static unroll is fine at the small Cout used here.
    for g in range(cout):
        y = jnp.sum(weighted[:, 4 * g:4 * (g + 1), :], axis=1)   # (NB, HW)
        o_ref[:, g, :] = (y + b2[:, g:g + 1]).astype(o_ref.dtype)


def _pick_block_batch(n, c, hw, itemsize, target_bytes):
    """Largest NB dividing N with input block <= target_bytes; prefer >= 4 grid
    steps (v7x: 2 TensorCores + pipelining), then >= 2, then the largest fit.
    NB has no sublane constraint: the block's last two dims are (C, HW)."""
    per_image = c * hw * itemsize
    divisors = [d for d in range(1, n + 1) if n % d == 0]
    fitting = [d for d in divisors if d * per_image <= target_bytes]
    if not fitting:
        # TODO(synk): for very large C*HW per image, tile the channel axis too
        # (2-D grid + pooled-stats VMEM scratch) instead of a 1-image block.
        return 1
    for min_steps in (4, 2):
        cands = [d for d in fitting if n // d >= min_steps]
        if cands:
            return max(cands)
    return max(fitting)


def attention_weighting_block(x_nchw, w1, b1, w2_grouped, b2,
                              *, target_block_bytes=8 << 20):
    """x_nchw: (N, C, H, W); w1: (C, C, 1, 1); b1: (C,);
    w2_grouped: (C//4, 4, 1, 1); b2: (C//4,).  Returns (N, C//4, H, W)."""
    n, c, h, w = x_nchw.shape
    assert c % 4 == 0, "inchannel must be divisible by 4 (groups = C // 4)"
    cout = c // 4
    hw = h * w
    dtype = x_nchw.dtype
    itemsize = jnp.dtype(dtype).itemsize

    # Free row-major view: (N, C, HW).
    x3 = x_nchw.reshape(n, c, hw)

    # conv11 weight transposed so the kernel computes pooled @ w1t.
    w1t = w1.reshape(c, c).T.astype(jnp.float32)             # w1t[i, o] = w1[o, i]
    b1r = b1.reshape(1, c).astype(jnp.float32)
    # grouped-conv weight flattened so column 4g+j holds w2[g, j].
    wgr = w2_grouped.reshape(1, c).astype(jnp.float32)
    b2r = b2.reshape(1, cout).astype(jnp.float32)

    nb = _pick_block_batch(n, c, hw, itemsize, target_block_bytes)
    grid = (n // nb,)

    # VMEM budget: double-buffered in/out blocks + constants (+ slack).
    in_blk = nb * c * hw * itemsize
    out_blk = nb * cout * hw * itemsize
    const_bytes = (c * c + 2 * c + cout) * 4
    vmem_needed = 2 * (in_blk + out_blk) + const_bytes + (2 << 20)
    # v7x has 64 MiB physical VMEM/TC; v5e/v6e have 128 MiB (default scoped 32).
    vmem_limit = int(min(max(32 << 20, vmem_needed), 96 << 20))

    cost = pl.CostEstimate(
        flops=int(n * (5 * c * hw + 4 * c * c)),
        transcendentals=int(2 * n * c),
        bytes_accessed=int(n * (c + cout) * hw * itemsize + const_bytes),
    )

    out = pl.pallas_call(
        _awb_kernel,
        out_shape=jax.ShapeDtypeStruct((n, cout, hw), dtype),
        grid_spec=pltpu.PrefetchScalarGridSpec(
            num_scalar_prefetch=0,
            grid=grid,
            in_specs=[
                pl.BlockSpec((nb, c, hw), lambda i: (i, 0, 0)),
                pl.BlockSpec((c, c), lambda i: (0, 0)),
                pl.BlockSpec((1, c), lambda i: (0, 0)),
                pl.BlockSpec((1, c), lambda i: (0, 0)),
                pl.BlockSpec((1, cout), lambda i: (0, 0)),
            ],
            out_specs=pl.BlockSpec((nb, cout, hw), lambda i: (i, 0, 0)),
        ),
        compiler_params=pltpu.CompilerParams(
            dimension_semantics=("parallel",),
            vmem_limit_bytes=vmem_limit,
        ),
        cost_estimate=cost,
    )(x3, w1t, b1r, wgr, b2r)

    return out.reshape(n, cout, h, w)


def reference_jax(x, w1, b1, w2_grouped, b2):
    """Plain-JAX reference matching the PyTorch forward (NCHW)."""
    n, c, h, w = x.shape
    cout = c // 4
    w1m = w1.reshape(c, c)
    avg = jnp.mean(x, axis=(2, 3))                           # (N, C)
    mx = jnp.max(x, axis=(2, 3))                             # (N, C)
    a1 = jax.nn.sigmoid(avg @ w1m.T + b1)
    a2 = jax.nn.sigmoid(mx @ w1m.T + b1)
    scale = (a1 + a2)[:, :, None, None]
    y_res = x + scale * x                                    # (N, C, H, W)
    yg = y_res.reshape(n, cout, 4, h, w)
    wg = w2_grouped.reshape(cout, 4)
    return jnp.einsum("ngihw,gi->nghw", yg, wg) + b2[None, :, None, None]


if __name__ == "__main__":
    key = jax.random.PRNGKey(0)
    k_x, k_w1, k_b1, k_w2, k_b2 = jax.random.split(key, 5)

    N, C, H, W = 16, 16, 16, 16        # inchannel=16 -> output channels 4
    x = jax.random.normal(k_x, (N, C, H, W), dtype=jnp.float32)

    # Deterministic parameter init (shapes per nn.Conv2d in __init__)
    w1 = jax.random.normal(k_w1, (C, C, 1, 1), dtype=jnp.float32) * 0.1
    b1 = jax.random.normal(k_b1, (C,), dtype=jnp.float32) * 0.1
    w2 = jax.random.normal(k_w2, (C // 4, 4, 1, 1), dtype=jnp.float32) * 0.1
    b2 = jax.random.normal(k_b2, (C // 4,), dtype=jnp.float32) * 0.1

    y = attention_weighting_block(x, w1, b1, w2, b2)
    y = jax.block_until_ready(y)

    y_ref = reference_jax(x, w1, b1, w2, b2)
    assert y.shape == (N, C // 4, H, W)
    assert jnp.allclose(y, y_ref, atol=1e-4, rtol=1e-4), "mismatch vs reference"

    print("KERNEL_OK")
</pallas_src>

<mosaic_0001>
module attributes {stable_mosaic.version = 11 : i64} {
  func.func @_awb_kernel(%arg0: i32, %arg1: memref<4x16x256xf32, #tpu.memory_space<vmem>>, %arg2: memref<16x16xf32, #tpu.memory_space<vmem>>, %arg3: memref<1x16xf32, #tpu.memory_space<vmem>>, %arg4: memref<1x16xf32, #tpu.memory_space<vmem>>, %arg5: memref<1x4xf32, #tpu.memory_space<vmem>>, %arg6: memref<4x4x256xf32, #tpu.memory_space<vmem>>) attributes {dimension_semantics = [#tpu.dimension_semantics<parallel>], iteration_bounds = array<i64: 4>, scalar_prefetch = 0 : i64, scratch_operands = 0 : i64, tpu.core_type = #tpu.core_type<tc>, window_params = [{transform_indices = @transform_0, window_bounds = array<i64: 4, 16, 256>}, {pipeline_mode = #tpu.pipeline_mode<synchronous>, transform_indices = @transform_1, window_bounds = array<i64: 16, 16>}, {pipeline_mode = #tpu.pipeline_mode<synchronous>, transform_indices = @transform_2, window_bounds = array<i64: 1, 16>}, {pipeline_mode = #tpu.pipeline_mode<synchronous>, transform_indices = @transform_3, window_bounds = array<i64: 1, 16>}, {pipeline_mode = #tpu.pipeline_mode<synchronous>, transform_indices = @transform_4, window_bounds = array<i64: 1, 4>}, {transform_indices = @transform_5, window_bounds = array<i64: 4, 4, 256>}]} {
    %c0 = arith.constant 0 : index
    %c0_0 = arith.constant 0 : index
    %c0_1 = arith.constant 0 : index
    %0 = vector.load %arg1[%c0, %c0_0, %c0_1] : memref<4x16x256xf32, #tpu.memory_space<vmem>>, vector<4x16x256xf32>
    %cst = arith.constant dense<0.000000e+00> : vector<4x16xf32>
    %1 = vector.multi_reduction <add>, %0, %cst [2] : vector<4x16x256xf32> to vector<4x16xf32>
    %cst_2 = arith.constant 3.906250e-03 : f32
    %2 = vector.broadcast %cst_2 : f32 to vector<4x16xf32>
    %3 = arith.mulf %1, %2 : vector<4x16xf32>
    %cst_3 = arith.constant dense<0xFF800000> : vector<4x16xf32>
    %4 = vector.multi_reduction <maximumf>, %0, %cst_3 [2] : vector<4x16x256xf32> to vector<4x16xf32>
    %5 = tpu.concatenate %3, %4 in 0 : vector<4x16xf32>, vector<4x16xf32> -> vector<8x16xf32>
    %c0_4 = arith.constant 0 : index
    %c0_5 = arith.constant 0 : index
    %6 = vector.load %arg2[%c0_4, %c0_5] : memref<16x16xf32, #tpu.memory_space<vmem>>, vector<16x16xf32>
    %cst_6 = arith.constant dense<0.000000e+00> : vector<8x16xf32>
    %7 = tpu.matmul %5, %6, %cst_6 {dimension_numbers = #tpu.dot_dimension_numbers<[1], [0], [0], [1], [0, 0, 1, 1], [], []>} : vector<8x16xf32>, vector<16x16xf32>, vector<8x16xf32> -> vector<8x16xf32>
    %c0_7 = arith.constant 0 : index
    %c0_8 = arith.constant 0 : index
    %8 = vector.load %arg3[%c0_7, %c0_8] : memref<1x16xf32, #tpu.memory_space<vmem>>, vector<1x16xf32>
    %9 = vector.broadcast %8 : vector<1x16xf32> to vector<8x16xf32>
    %10 = arith.addf %7, %9 : vector<8x16xf32>
    %11 = arith.negf %10 : vector<8x16xf32>
    %12 = math.exp %11 : vector<8x16xf32>
    %cst_9 = arith.constant 1.000000e+00 : f32
    %13 = vector.broadcast %cst_9 : f32 to vector<8x16xf32>
    %14 = arith.addf %13, %12 : vector<8x16xf32>
    %15 = arith.divf %13, %14 : vector<8x16xf32>
    %16 = vector.extract_strided_slice %15 {offsets = [0, 0], sizes = [4, 16], strides = [1, 1]} : vector<8x16xf32> to vector<4x16xf32>
    %17 = vector.extract_strided_slice %15 {offsets = [4, 0], sizes = [4, 16], strides = [1, 1]} : vector<8x16xf32> to vector<4x16xf32>
    %18 = arith.addf %16, %17 : vector<4x16xf32>
    %cst_10 = arith.constant 1.000000e+00 : f32
    %19 = vector.broadcast %cst_10 : f32 to vector<4x16xf32>
    %20 = arith.addf %18, %19 : vector<4x16xf32>
    %c0_11 = arith.constant 0 : index
    %c0_12 = arith.constant 0 : index
    %21 = vector.load %arg4[%c0_11, %c0_12] : memref<1x16xf32, #tpu.memory_space<vmem>>, vector<1x16xf32>
    %22 = vector.broadcast %21 : vector<1x16xf32> to vector<4x16xf32>
    %23 = arith.mulf %20, %22 : vector<4x16xf32>
    %24 = vector.shape_cast %23 : vector<4x16xf32> to vector<4x16x1xf32>
    %25 = vector.broadcast %24 : vector<4x16x1xf32> to vector<4x16x256xf32>
    %26 = arith.mulf %0, %25 : vector<4x16x256xf32>
    %c0_13 = arith.constant 0 : index
    %c0_14 = arith.constant 0 : index
    %27 = vector.load %arg5[%c0_13, %c0_14] : memref<1x4xf32, #tpu.memory_space<vmem>>, vector<1x4xf32>
    %28 = vector.extract_strided_slice %26 {offsets = [0, 0, 0], sizes = [4, 4, 256], strides = [1, 1, 1]} : vector<4x16x256xf32> to vector<4x4x256xf32>
    %cst_15 = arith.constant dense<0.000000e+00> : vector<4x256xf32>
    %29 = vector.multi_reduction <add>, %28, %cst_15 [1] : vector<4x4x256xf32> to vector<4x256xf32>
    %30 = vector.extract_strided_slice %27 {offsets = [0, 0], sizes = [1, 1], strides = [1, 1]} : vector<1x4xf32> to vector<1x1xf32>
    %31 = vector.broadcast %30 : vector<1x1xf32> to vector<4x256xf32>
    %32 = arith.addf %29, %31 : vector<4x256xf32>
    %c0_16 = arith.constant 0 : index
    %c0_17 = arith.constant 0 : index
    %c0_18 = arith.constant 0 : index
    %33 = vector.load %arg6[%c0_16, %c0_17, %c0_18] : memref<4x4x256xf32, #tpu.memory_space<vmem>>, vector<4x1x256xf32>
    %34 = vector.shape_cast %33 : vector<4x1x256xf32> to vector<4x256xf32>
    %35 = vector.shape_cast %32 : vector<4x256xf32> to vector<4x1x256xf32>
    tpu.vector_store %arg6[%c0_16, %c0_17, %c0_18], %35 {strides = array<i32>} : memref<4x4x256xf32, #tpu.memory_space<vmem>>, vector<4x1x256xf32>,
    %36 = vector.extract_strided_slice %26 {offsets = [0, 4, 0], sizes = [4, 4, 256], strides = [1, 1, 1]} : vector<4x16x256xf32> to vector<4x4x256xf32>
    %cst_19 = arith.constant dense<0.000000e+00> : vector<4x256xf32>
    %37 = vector.multi_reduction <add>, %36, %cst_19 [1] : vector<4x4x256xf32> to vector<4x256xf32>
    %38 = vector.extract_strided_slice %27 {offsets = [0, 1], sizes = [1, 1], strides = [1, 1]} : vector<1x4xf32> to vector<1x1xf32>
    %39 = vector.broadcast %38 : vector<1x1xf32> to vector<4x256xf32>
    %40 = arith.addf %37, %39 : vector<4x256xf32>
    %c0_20 = arith.constant 0 : index
    %c1 = arith.constant 1 : index
    %c0_21 = arith.constant 0 : index
    %41 = vector.load %arg6[%c0_20, %c1, %c0_21] : memref<4x4x256xf32, #tpu.memory_space<vmem>>, vector<4x1x256xf32>
    %42 = vector.shape_cast %41 : vector<4x1x256xf32> to vector<4x256xf32>
    %43 = vector.shape_cast %40 : vector<4x256xf32> to vector<4x1x256xf32>
    tpu.vector_store %arg6[%c0_20, %c1, %c0_21], %43 {strides = array<i32>} : memref<4x4x256xf32, #tpu.memory_space<vmem>>, vector<4x1x256xf32>,
    %44 = vector.extract_strided_slice %26 {offsets = [0, 8, 0], sizes = [4, 4, 256], strides = [1, 1, 1]} : vector<4x16x256xf32> to vector<4x4x256xf32>
    %cst_22 = arith.constant dense<0.000000e+00> : vector<4x256xf32>
    %45 = vector.multi_reduction <add>, %44, %cst_22 [1] : vector<4x4x256xf32> to vector<4x256xf32>
    %46 = vector.extract_strided_slice %27 {offsets = [0, 2], sizes = [1, 1], strides = [1, 1]} : vector<1x4xf32> to vector<1x1xf32>
    %47 = vector.broadcast %46 : vector<1x1xf32> to vector<4x256xf32>
    %48 = arith.addf %45, %47 : vector<4x256xf32>
    %c0_23 = arith.constant 0 : index
    %c2 = arith.constant 2 : index
    %c0_24 = arith.constant 0 : index
    %49 = vector.load %arg6[%c0_23, %c2, %c0_24] : memref<4x4x256xf32, #tpu.memory_space<vmem>>, vector<4x1x256xf32>
    %50 = vector.shape_cast %49 : vector<4x1x256xf32> to vector<4x256xf32>
    %51 = vector.shape_cast %48 : vector<4x256xf32> to vector<4x1x256xf32>
    tpu.vector_store %arg6[%c0_23, %c2, %c0_24], %51 {strides = array<i32>} : memref<4x4x256xf32, #tpu.memory_space<vmem>>, vector<4x1x256xf32>,
    %52 = vector.extract_strided_slice %26 {offsets = [0, 12, 0], sizes = [4, 4, 256], strides = [1, 1, 1]} : vector<4x16x256xf32> to vector<4x4x256xf32>
    %cst_25 = arith.constant dense<0.000000e+00> : vector<4x256xf32>
    %53 = vector.multi_reduction <add>, %52, %cst_25 [1] : vector<4x4x256xf32> to vector<4x256xf32>
    %54 = vector.extract_strided_slice %27 {offsets = [0, 3], sizes = [1, 1], strides = [1, 1]} : vector<1x4xf32> to vector<1x1xf32>
    %55 = vector.broadcast %54 : vector<1x1xf32> to vector<4x256xf32>
    %56 = arith.addf %53, %55 : vector<4x256xf32>
    %c0_26 = arith.constant 0 : index
    %c3 = arith.constant 3 : index
    %c0_27 = arith.constant 0 : index
    %57 = vector.load %arg6[%c0_26, %c3, %c0_27] : memref<4x4x256xf32, #tpu.memory_space<vmem>>, vector<4x1x256xf32>
    %58 = vector.shape_cast %57 : vector<4x1x256xf32> to vector<4x256xf32>
    %59 = vector.shape_cast %56 : vector<4x256xf32> to vector<4x1x256xf32>
    tpu.vector_store %arg6[%c0_26, %c3, %c0_27], %59 {strides = array<i32>} : memref<4x4x256xf32, #tpu.memory_space<vmem>>, vector<4x1x256xf32>,
    return
  }
  func.func @transform_0(%arg0: i32) -> (i32, i32, i32) {
    %c0_i32 = arith.constant 0 : i32
    %c0_i32_0 = arith.constant 0 : i32
    %c0_i32_1 = arith.constant 0 : i32
    return %arg0, %c0_i32, %c0_i32_0 : i32, i32, i32
  }
  func.func @transform_1(%arg0: i32) -> (i32, i32) {
    %c0_i32 = arith.constant 0 : i32
    %c0_i32_0 = arith.constant 0 : i32
    %c0_i32_1 = arith.constant 0 : i32
    return %c0_i32, %c0_i32_0 : i32, i32
  }
  func.func @transform_2(%arg0: i32) -> (i32, i32) {
    %c0_i32 = arith.constant 0 : i32
    %c0_i32_0 = arith.constant 0 : i32
    %c0_i32_1 = arith.constant 0 : i32
    return %c0_i32, %c0_i32_0 : i32, i32
  }
  func.func @transform_3(%arg0: i32) -> (i32, i32) {
    %c0_i32 = arith.constant 0 : i32
    %c0_i32_0 = arith.constant 0 : i32
    %c0_i32_1 = arith.constant 0 : i32
    return %c0_i32, %c0_i32_0 : i32, i32
  }
  func.func @transform_4(%arg0: i32) -> (i32, i32) {
    %c0_i32 = arith.constant 0 : i32
    %c0_i32_0 = arith.constant 0 : i32
    %c0_i32_1 = arith.constant 0 : i32
    return %c0_i32, %c0_i32_0 : i32, i32
  }
  func.func @transform_5(%arg0: i32) -> (i32, i32, i32) {
    %c0_i32 = arith.constant 0 : i32
    %c0_i32_0 = arith.constant 0 : i32
    %c0_i32_1 = arith.constant 0 : i32
    return %arg0, %c0_i32, %c0_i32_0 : i32, i32, i32
  }
}

</mosaic_0001>

<llo_original>
// kernel: tpu_custom_call.1
$region0: #{tpu_custom_call.1}
  #allocation0 [shape = 'u32[]', space=smem, size = 0x4, offset = 0x4, fixed_abs, tag = 'smem constant byte address 0x4 - core index']
  #allocation1 [shape = 'u32[144,128]{1,0:T(1,128)}', space=vmem, size = 0x12000, scoped, tag = 'internal scratch']
  %s0 = inlined_call_operand.hbm [shape: f32[16,16,256], index: 0, kind: input, shape index: {}]
  %s1 = inlined_call_operand.hbm [shape: f32[16,16], index: 1, kind: input, shape index: {}]
  %s2 = inlined_call_operand.vmem [shape: f32[1,16], index: 2, kind: input, shape index: {}]
  %s3 = inlined_call_operand.vmem [shape: f32[1,16], index: 3, kind: input, shape index: {}]
  %s4 = inlined_call_operand.vmem [shape: f32[1,4], index: 4, kind: input, shape index: {}]
  %s5 = inlined_call_operand.hbm [shape: f32[16,4,256], index: 5, kind: output, shape index: {}]
  %s6 = sld [smem:[#allocation0]]
  $region61: #{tpu_custom_call.1} parent=0
    _
  %s8 = ssub.s32 1, %s6
  %s9 = scalar_select 0, %s8, %s6
  $region1: #{tpu_custom_call.1} parent=0
    #allocation2 [shape = 'u8[131072]{0}', space=vmem, size = 0x20000, scoped, tag = 'input window, operand 0']
    #allocation3 [shape = 's32[2]{0}', space=sflag, size = 0x8, scoped, tag = 'scoped memory for tpu_custom_call.1']
    #allocation4 [shape = 's32[2]{0}', space=sflag, size = 0x8, scoped, tag = 'scoped memory for tpu_custom_call.1']
    #allocation5 [shape = 'u8[8192]{0}', space=vmem, size = 0x2000, scoped, tag = 'input window, operand 1, single buffered']
    #allocation6 [shape = 's32[1]{0}', space=sflag, size = 0x4, scoped, tag = 'scoped memory for tpu_custom_call.1']
    #allocation7 [shape = 'u8[32768]{0}', space=vmem, size = 0x8000, scoped, tag = 'output window, operand 0']
    %10 = vsyncpa [#allocation3], 0
    %s11 = scalar_lea.sflag [#allocation3], 1
    %12 = vsyncpa %s11, 0
    %13 = vsyncpa [#allocation6], 0
    %14 = vsyncpa [#allocation4], 0
    %s15 = scalar_lea.sflag [#allocation4], 1
    %16 = vsyncpa %s15, 0
    loop: start=0, step=1, limit=6
    $region2: #{tpu_custom_call.1} parent=1 // loop_pre_header
      _
    $region3: #{tpu_custom_call.1} parent=1 // loop_header
      %s18 = sphi 0, %s22
      %p19 = scmp.ge.s32.totalorder %s18, 6
      %s28 = sphi 0, %s30
      %s31 = sphi 0, %s28
      %s32 = sphi 0, %s31
      %s48 = sphi 0, %s32
      %s52 = sphi 0, %s52
      %s54 = sphi 0, %s52
      %s55 = sphi 0, %s54
      %s69 = sphi 0, %s55
      %s73 = sphi 0, %s73
      %s75 = sphi 0, %s73
      %s76 = sphi 0, %s75
      %s90 = sphi 0, %s76
      %s94 = sphi 0, %s94
      %s96 = sphi 0, %s94
      %s97 = sphi 0, %s96
      %s111 = sphi 0, %s97
      %s115 = sphi 0, %s115
      %s117 = sphi 0, %s115
      %s118 = sphi 0, %s117
      %s132 = sphi 0, %s118
      %s138 = sphi 0, %s140
      %s141 = sphi 0, %s138
      %s142 = sphi 0, %s141
      %s158 = sphi 0, %s142
    $region4: #{tpu_custom_call.1} parent=1 // loop_header_branch
      %21 = sbr.rel (%p19) target = $region8
    $region5: #{tpu_custom_call.1} parent=1 // loop_body
      %s23 = ssub.s32 %s18, 1
      %s24 = ssub.s32 %s18, 2
      %s25 = sadd.s32 %s18, 1
      %s26 = ssub.s32 %s18, %s25
      %p27 = scmp.eq.s32.totalorder %s26, 0
      %s29 = sadd.s32 %s28, 1
      %s30 = scalar_select %p27, %s28, %s29
      %p33 = pneg %p27
      %p34 = scmp.eq.s32.totalorder %s18, 3
      %p35 = por %p33, %p34
      %p36 = scmp.ne.s32.totalorder %s28, %s31
      %p37 = scmp.eq.s32.totalorder %s18, 0
      %p38 = por %p36, %p37
      %p39 = scmp.ne.s32.totalorder %s28, %s31
      %p40 = scmp.eq.s32.totalorder %s23, 3
      %p41 = por %p39, %p40
      %p42 = scmp.ne.s32.totalorder %s31, %s32
      %p43 = scmp.eq.s32.totalorder %s23, 0
      %p44 = por %p42, %p43
      %p45 = scmp.ne.s32.totalorder %s31, %s32
      %p46 = scmp.eq.s32.totalorder %s24, 3
      %p47 = por %p45, %p46
      %p49 = scmp.ne.s32.totalorder %s32, %s48
      %p50 = scmp.eq.s32.totalorder %s24, 0
      %p51 = por %p49, %p50
      %s53 = sadd.s32 %s52, 1
      %p56 = scmp.eq.s32.totalorder %s18, 3
      %p57 = scmp.ne.s32.totalorder %s52, %s54
      %p58 = scmp.eq.s32.totalorder %s18, 0
      %p59 = por %p57, %p58
      %p60 = scmp.ne.s32.totalorder %s52, %s54
      %p61 = scmp.eq.s32.totalorder %s23, 3
      %p62 = por %p60, %p61
      %p63 = scmp.ne.s32.totalorder %s54, %s55
      %p64 = scmp.eq.s32.totalorder %s23, 0
      %p65 = por %p63, %p64
      %p66 = scmp.ne.s32.totalorder %s54, %s55
      %p67 = scmp.eq.s32.totalorder %s24, 3
      %p68 = por %p66, %p67
      %p70 = scmp.ne.s32.totalorder %s55, %s69
      %p71 = scmp.eq.s32.totalorder %s24, 0
      %p72 = por %p70, %p71
      %s74 = sadd.s32 %s73, 1
      %p77 = scmp.eq.s32.totalorder %s18, 3
      %p78 = scmp.ne.s32.totalorder %s73, %s75
      %p79 = scmp.eq.s32.totalorder %s18, 0
      %p80 = por %p78, %p79
      %p81 = scmp.ne.s32.totalorder %s73, %s75
      %p82 = scmp.eq.s32.totalorder %s23, 3
      %p83 = por %p81, %p82
      %p84 = scmp.ne.s32.totalorder %s75, %s76
      %p85 = scmp.eq.s32.totalorder %s23, 0
      %p86 = por %p84, %p85
      %p87 = scmp.ne.s32.totalorder %s75, %s76
      %p88 = scmp.eq.s32.totalorder %s24, 3
      %p89 = por %p87, %p88
      %p91 = scmp.ne.s32.totalorder %s76, %s90
      %p92 = scmp.eq.s32.totalorder %s24, 0
      %p93 = por %p91, %p92
      %s95 = sadd.s32 %s94, 1
      %p98 = scmp.eq.s32.totalorder %s18, 3
      %p99 = scmp.ne.s32.totalorder %s94, %s96
      %p100 = scmp.eq.s32.totalorder %s18, 0
      %p101 = por %p99, %p100
      %p102 = scmp.ne.s32.totalorder %s94, %s96
      %p103 = scmp.eq.s32.totalorder %s23, 3
      %p104 = por %p102, %p103
      %p105 = scmp.ne.s32.totalorder %s96, %s97
      %p106 = scmp.eq.s32.totalorder %s23, 0
      %p107 = por %p105, %p106
      %p108 = scmp.ne.s32.totalorder %s96, %s97
      %p109 = scmp.eq.s32.totalorder %s24, 3
      %p110 = por %p108, %p109
      %p112 = scmp.ne.s32.totalorder %s97, %s111
      %p113 = scmp.eq.s32.totalorder %s24, 0
      %p114 = por %p112, %p113
      %s116 = sadd.s32 %s115, 1
      %p119 = scmp.eq.s32.totalorder %s18, 3
      %p120 = scmp.ne.s32.totalorder %s115, %s117
      %p121 = scmp.eq.s32.totalorder %s18, 0
      %p122 = por %p120, %p121
      %p123 = scmp.ne.s32.totalorder %s115, %s117
      %p124 = scmp.eq.s32.totalorder %s23, 3
      %p125 = por %p123, %p124
      %p126 = scmp.ne.s32.totalorder %s117, %s118
      %p127 = scmp.eq.s32.totalorder %s23, 0
      %p128 = por %p126, %p127
      %p129 = scmp.ne.s32.totalorder %s117, %s118
      %p130 = scmp.eq.s32.totalorder %s24, 3
      %p131 = por %p129, %p130
      %p133 = scmp.ne.s32.totalorder %s118, %s132
      %p134 = scmp.eq.s32.totalorder %s24, 0
      %p135 = por %p133, %p134
      %s136 = ssub.s32 %s18, %s25
      %p137 = scmp.eq.s32.totalorder %s136, 0
      %s139 = sadd.s32 %s138, 1
      %s140 = scalar_select %p137, %s138, %s139
      %p143 = pneg %p137
      %p144 = scmp.eq.s32.totalorder %s18, 3
      %p145 = por %p143, %p144
      %p146 = scmp.ne.s32.totalorder %s138, %s141
      %p147 = scmp.eq.s32.totalorder %s18, 0
      %p148 = por %p146, %p147
      %p149 = scmp.ne.s32.totalorder %s138, %s141
      %p150 = scmp.eq.s32.totalorder %s23, 3
      %p151 = por %p149, %p150
      %p152 = scmp.ne.s32.totalorder %s141, %s142
      %p153 = scmp.eq.s32.totalorder %s23, 0
      %p154 = por %p152, %p153
      %p155 = scmp.ne.s32.totalorder %s141, %s142
      %p156 = scmp.eq.s32.totalorder %s24, 3
      %p157 = por %p155, %p156
      %p159 = scmp.ne.s32.totalorder %s142, %s158
      %p160 = scmp.eq.s32.totalorder %s24, 0
      %p161 = por %p159, %p160
      %p162 = scmp.le.s32.totalorder 1, %s18
      %p163 = scmp.lt.s32.totalorder %s18, 5
      %p164 = pnand %p162, %p163
      %p165 = pneg %p164
      // Predicated region
      $region9: #{tpu_custom_call.1} parent=5 // pred_check
        _
      $region10: #{tpu_custom_call.1} parent=5 // pred_check_branch
        %167 = sbr.rel (%p164) target = $region12
      $region11: #{tpu_custom_call.1} parent=5 // pred_region
        %s168 = ssub.s32 %s18, 1
        // Predicated region
        $region13: #{tpu_custom_call.1} parent=11 // pred_check
          %p169 = pneg %p65
        $region14: #{tpu_custom_call.1} parent=11 // pred_check_branch
          %171 = sbr.rel (%p169) target = $region16
        $region15: #{tpu_custom_call.1} parent=11 // pred_region
          %s173 = ssub.s32 256, 256
          %174 = vsyncadd [#allocation6], %s173
          %s175 = sshll.u32 [#allocation5], 4
          %s176 = int_to_ptr.vmem [resolvable:$true] %s175
          %181 = dma.hbm_to_vmem [thread:$0]  %s1, 256, %s176, [#allocation6], 128, 128, 8
        $region16: #{tpu_custom_call.1} parent=11 // pred_fallthru
          _
        // Predicated region
        $region17: #{tpu_custom_call.1} parent=11 // pred_check
          %p182 = pneg %p86
        $region18: #{tpu_custom_call.1} parent=11 // pred_check_branch
          %184 = sbr.rel (%p182) target = $region20
        $region19: #{tpu_custom_call.1} parent=11 // pred_region
          _
        $region20: #{tpu_custom_call.1} parent=11 // pred_fallthru
          _
        // Predicated region
        $region21: #{tpu_custom_call.1} parent=11 // pred_check
          %p185 = pneg %p107
        $region22: #{tpu_custom_call.1} parent=11 // pred_check_branch
          %187 = sbr.rel (%p185) target = $region24
        $region23: #{tpu_custom_call.1} parent=11 // pred_region
          _
        $region24: #{tpu_custom_call.1} parent=11 // pred_fallthru
          _
        // Predicated region
        $region25: #{tpu_custom_call.1} parent=11 // pred_check
          %p188 = pneg %p128
        $region26: #{tpu_custom_call.1} parent=11 // pred_check_branch
          %190 = sbr.rel (%p188) target = $region28
        $region27: #{tpu_custom_call.1} parent=11 // pred_region
          _
        $region28: #{tpu_custom_call.1} parent=11 // pred_fallthru
          _
      $region12: #{tpu_custom_call.1} parent=5 // pred_fallthru
        _
      %p191 = scmp.lt.s32.totalorder %s18, 4
      // Predicated region
      $region29: #{tpu_custom_call.1} parent=5 // pred_check
        %p192 = pneg %p191
      $region30: #{tpu_custom_call.1} parent=5 // pred_check_branch
        %194 = sbr.rel (%p192) target = $region32
      $region31: #{tpu_custom_call.1} parent=5 // pred_region
        // Predicated region
        $region33: #{tpu_custom_call.1} parent=31 // pred_check
          %p195 = pneg %p38
        $region34: #{tpu_custom_call.1} parent=31 // pred_check_branch
          %197 = sbr.rel (%p195) target = $region36
        $region35: #{tpu_custom_call.1} parent=31 // pred_region
          %s198 = sand.u32 %s28, 1
          %s199 = scalar_lea.sflag [#allocation3], %s198
          %s200 = sand.u32 %s28, 1
          %s201 = smul.addr %s200, 128
          %s202 = scalar_lea.vmem [#allocation2], %s201
          %s203 = smul.u32 4, %s18
          %s205 = ssub.s32 2048, 2048
          %206 = vsyncadd %s199, %s205
          %s207 = smul.addr %s203, 4
          %s208 = smul.addr %s207, 128
          %s209 = scalar_lea.hbm %s0, %s208
          %s210 = sshll.u32 %s202, 4
          %s211 = int_to_ptr.vmem [resolvable:$true] %s210
          %216 = dma.hbm_to_vmem [thread:$0]  %s209, 2048, %s211, %s199, 256, 256, 16
        $region36: #{tpu_custom_call.1} parent=31 // pred_fallthru
          _
      $region32: #{tpu_custom_call.1} parent=5 // pred_fallthru
        _
      %p217 = scmp.le.s32.totalorder 1, %s18
      %p218 = scmp.lt.s32.totalorder %s18, 5
      %p219 = pnand %p217, %p218
      %p220 = pneg %p219
      // Predicated region
      $region37: #{tpu_custom_call.1} parent=5 // pred_check
        _
      $region38: #{tpu_custom_call.1} parent=5 // pred_check_branch
        %222 = sbr.rel (%p219) target = $region40
      $region39: #{tpu_custom_call.1} parent=5 // pred_region
        %s223 = ssub.s32 %s18, 1
        %s224 = sand.u32 %s31, 1
        %s225 = scalar_lea.sflag [#allocation3], %s224
        %s226 = sand.u32 %s31, 1
        %s227 = smul.addr %s226, 128
        %s228 = scalar_lea.vmem [#allocation2], %s227
        // Predicated region
        $region41: #{tpu_custom_call.1} parent=39 // pred_check
          %p229 = pneg %p44
        $region42: #{tpu_custom_call.1} parent=39 // pred_check_branch
          %231 = sbr.rel (%p229) target = $region44
        $region43: #{tpu_custom_call.1} parent=39 // pred_region
          %232 = dma.done %s225, 2048
        $region44: #{tpu_custom_call.1} parent=39 // pred_fallthru
          _
        // Predicated region
        $region45: #{tpu_custom_call.1} parent=39 // pred_check
          %p233 = pneg %p65
        $region46: #{tpu_custom_call.1} parent=39 // pred_check_branch
          %235 = sbr.rel (%p233) target = $region48
        $region47: #{tpu_custom_call.1} parent=39 // pred_region
          %236 = dma.done [#allocation6], 256
        $region48: #{tpu_custom_call.1} parent=39 // pred_fallthru
          _
        %s237 = sand.u32 %s31, 1
        %s238 = scalar_lea.sflag [#allocation3], %s237
        %s239 = sand.u32 %s31, 1
        %s240 = smul.addr %s239, 128
        %s241 = scalar_lea.vmem [#allocation2], %s240
        %p242 = pneg %p44
        %p243 = pneg %p41
        %p244 = pneg %p65
        %p245 = pneg %p62
        %p246 = pneg %p86
        %p247 = pneg %p83
        %p248 = pneg %p107
        %p249 = pneg %p104
        %p250 = pneg %p128
        %p251 = pneg %p125
        %p252 = pneg %p154
        %p253 = pneg %p151
        %s254 = sand.u32 %s141, 1
        %s255 = scalar_lea.sflag [#allocation4], %s254
        %s256 = sand.u32 %s141, 1
        %s257 = smul.addr %s256, 32
        %s258 = scalar_lea.vmem [#allocation7], %s257
        %s259 = smul.u32 4, %s23
        %s260 = smul.u32 4, %s23
        %v261 = vld [vmem:[%s228] sm:$0xff]
        %v262 = vld [vmem:[%s228 + $0x8] sm:$0xff]
        %v263 = vld [vmem:[%s228 + $0x10] sm:$0xff]
        %v264 = vld [vmem:[%s228 + $0x18] sm:$0xff]
        %v265 = vld [vmem:[%s228 + $0x20] sm:$0xff]
        %v266 = vld [vmem:[%s228 + $0x28] sm:$0xff]
        %v267 = vld [vmem:[%s228 + $0x30] sm:$0xff]
        %v268 = vld [vmem:[%s228 + $0x38] sm:$0xff]
        %v269 = vld [vmem:[%s228 + $0x40] sm:$0xff]
        %v270 = vld [vmem:[%s228 + $0x48] sm:$0xff]
        %v271 = vld [vmem:[%s228 + $0x50] sm:$0xff]
        %v272 = vld [vmem:[%s228 + $0x58] sm:$0xff]
        %v273 = vld [vmem:[%s228 + $0x60] sm:$0xff]
        %v274 = vld [vmem:[%s228 + $0x68] sm:$0xff]
        %v275 = vld [vmem:[%s228 + $0x70] sm:$0xff]
        %v276 = vld [vmem:[%s228 + $0x78] sm:$0xff]
        %v277 = vadd.f32 %v261, %v262
        %278 = vadd.xlane.f32.xlu0 %v277
        %v279 = vpop.xlane.xlu0 %278
        %v280 = vadd.f32 %v263, %v264
        %281 = vadd.xlane.f32.xlu0 %v280
        %v282 = vpop.xlane.xlu0 %281
        %v283 = vadd.f32 %v265, %v266
        %284 = vadd.xlane.f32.xlu0 %v283
        %v285 = vpop.xlane.xlu0 %284
        %v286 = vadd.f32 %v267, %v268
        %287 = vadd.xlane.f32.xlu0 %v286
        %v288 = vpop.xlane.xlu0 %287
        %v289 = vadd.f32 %v269, %v270
        %290 = vadd.xlane.f32.xlu0 %v289
        %v291 = vpop.xlane.xlu0 %290
        %v292 = vadd.f32 %v271, %v272
        %293 = vadd.xlane.f32.xlu0 %v292
        %v294 = vpop.xlane.xlu0 %293
        %v295 = vadd.f32 %v273, %v274
        %296 = vadd.xlane.f32.xlu0 %v295
        %v297 = vpop.xlane.xlu0 %296
        %v298 = vadd.f32 %v275, %v276
        %299 = vadd.xlane.f32.xlu0 %v298
        %v300 = vpop.xlane.xlu0 %299
        %v301 = vmul.f32 %v279, 0.00390625
        %v302 = vmul.f32 %v282, 0.00390625
        %v303 = vmul.f32 %v285, 0.00390625
        %v304 = vmul.f32 %v288, 0.00390625
        %v305 = vmul.f32 %v291, 0.00390625
        %v306 = vmul.f32 %v294, 0.00390625
        %v307 = vmul.f32 %v297, 0.00390625
        %v308 = vmul.f32 %v300, 0.00390625
        %v309 = vmax.f32 %v261, %v262
        %310 = vmax.xlane.f32.xlu0 %v309
        %v311 = vpop.xlane.xlu0 %310
        %v312 = vmax.f32 %v263, %v264
        %313 = vmax.xlane.f32.xlu0 %v312
        %v314 = vpop.xlane.xlu0 %313
        %v315 = vmax.f32 %v265, %v266
        %316 = vmax.xlane.f32.xlu0 %v315
        %v317 = vpop.xlane.xlu0 %316
        %v318 = vmax.f32 %v267, %v268
        %319 = vmax.xlane.f32.xlu0 %v318
        %v320 = vpop.xlane.xlu0 %319
        %v321 = vmax.f32 %v269, %v270
        %322 = vmax.xlane.f32.xlu0 %v321
        %v323 = vpop.xlane.xlu0 %322
        %v324 = vmax.f32 %v271, %v272
        %325 = vmax.xlane.f32.xlu0 %v324
        %v326 = vpop.xlane.xlu0 %325
        %v327 = vmax.f32 %v273, %v274
        %328 = vmax.xlane.f32.xlu0 %v327
        %v329 = vpop.xlane.xlu0 %328
        %v330 = vmax.f32 %v275, %v276
        %331 = vmax.xlane.f32.xlu0 %v330
        %v332 = vpop.xlane.xlu0 %331
        %v341 = vlaneseq
        %v342 = vand.u32 %v341, 127
        %v343 = vlaneseq
        %v344 = vshrl.u32 %v343, 7
        %v345 = vsub.s32 %v342, %v344
        %v346 = vrot.slane %v301, %v345
        %v347 = vadd.s32 %v342, 4294967288
        %v348 = vlaneseq
        %v349 = vshrl.u32 %v348, 7
        %v350 = vsub.s32 %v347, %v349
        %v351 = vrot.slane %v302, %v350
        %vm352 = vcmask 130112
        %v353 = vsel %vm352, %v351, %v346
        %v354 = vlaneseq
        %v355 = vshrl.u32 %v354, 7
        %v356 = vsub.s32 %v342, %v355
        %v357 = vrot.slane %v303, %v356
        %v358 = vlaneseq
        %v359 = vshrl.u32 %v358, 7
        %v360 = vsub.s32 %v347, %v359
        %v361 = vrot.slane %v304, %v360
        %v362 = vsel %vm352, %v361, %v357
        %v363 = vlaneseq
        %v364 = vshrl.u32 %v363, 7
        %v365 = vsub.s32 %v342, %v364
        %v366 = vrot.slane %v305, %v365
        %v367 = vlaneseq
        %v368 = vshrl.u32 %v367, 7
        %v369 = vsub.s32 %v347, %v368
        %v370 = vrot.slane %v306, %v369
        %v371 = vsel %vm352, %v370, %v366
        %v372 = vlaneseq
        %v373 = vshrl.u32 %v372, 7
        %v374 = vsub.s32 %v342, %v373
        %v375 = vrot.slane %v307, %v374
        %v376 = vlaneseq
        %v377 = vshrl.u32 %v376, 7
        %v378 = vsub.s32 %v347, %v377
        %v379 = vrot.slane %v308, %v378
        %v380 = vsel %vm352, %v379, %v375
        %vm381 = vcmask 1041409
        %v382 = vsel %vm381, %v362, %v353
        %vm383 = vcmask 1042434
        %v384 = vsel %vm383, %v371, %v382
        %vm385 = vcmask 1043459
        %v386 = vsel %vm385, %v380, %v384
        %v396 = vlaneseq
        %v397 = vshrl.u32 %v396, 7
        %v398 = vsub.s32 %v342, %v397
        %v399 = vrot.slane %v311, %v398
        %v400 = vlaneseq
        %v401 = vshrl.u32 %v400, 7
        %v402 = vsub.s32 %v347, %v401
        %v403 = vrot.slane %v314, %v402
        %v404 = vsel %vm352, %v403, %v399
        %v405 = vlaneseq
        %v406 = vshrl.u32 %v405, 7
        %v407 = vsub.s32 %v342, %v406
        %v408 = vrot.slane %v317, %v407
        %v409 = vlaneseq
        %v410 = vshrl.u32 %v409, 7
        %v411 = vsub.s32 %v347, %v410
        %v412 = vrot.slane %v320, %v411
        %v413 = vsel %vm352, %v412, %v408
        %v414 = vlaneseq
        %v415 = vshrl.u32 %v414, 7
        %v416 = vsub.s32 %v342, %v415
        %v417 = vrot.slane %v323, %v416
        %v418 = vlaneseq
        %v419 = vshrl.u32 %v418, 7
        %v420 = vsub.s32 %v347, %v419
        %v421 = vrot.slane %v326, %v420
        %v422 = vsel %vm352, %v421, %v417
        %v423 = vlaneseq
        %v424 = vshrl.u32 %v423, 7
        %v425 = vsub.s32 %v342, %v424
        %v426 = vrot.slane %v329, %v425
        %v427 = vlaneseq
        %v428 = vshrl.u32 %v427, 7
        %v429 = vsub.s32 %v347, %v428
        %v430 = vrot.slane %v332, %v429
        %v431 = vsel %vm352, %v430, %v426
        %vm432 = vcmask 1045509
        %v433 = vsel %vm432, %v413, %v404
        %vm434 = vcmask 1046534
        %v435 = vsel %vm434, %v422, %v433
        %vm436 = vcmask 1047559
        %v437 = vsel %vm436, %v431, %v435
        %vm439 = vcmask 1043456
        %v440 = vsel %vm439, %v386, %v437
        %v441 = vld [vmem:[#allocation5] sm:$0xff]
        %v442 = vld [vmem:[#allocation5 + $0x8] sm:$0xff]
        %v443 = vld [vmem:[%s2] sm:$0x1]
        %v445 = vlaneseq
        %v446 = vshrl.u32 %v445, 7
        %v447 = vsub.s32 0, %v446
        %v448 = vrot.slane %v443, %v447
        %vm450 = vcmask 130048
        %v452 = vsel %vm450, %v440, 0
        %454 = vmatprep.subr.mxu0 0.0
        %455 = vmatpush1.msra.mxu0 %v441
        %456 = vmatprep.subr.mxu0 0.0
        %457 = vmatpush1.msra.mxu0 %v442
        %458 = vmatprep.subr.mxu0 0.0
        %459 = vmatpush1.msra.mxu0 0.0
        %460 = vmatprep.subr.mxu0 0.0
        %461 = vmatpush1.msra.mxu0 0.0
        %462 = vmatprep.subr.mxu0 0.0
        %463 = vmatpush1.msra.mxu0 0.0
        %464 = vmatprep.subr.mxu0 0.0
        %465 = vmatpush1.msra.mxu0 0.0
        %466 = vmatprep.subr.mxu0 0.0
        %467 = vmatpush1.msra.mxu0 0.0
        %468 = vmatprep.subr.mxu0 0.0
        %469 = vmatpush1.msra.mxu0 0.0
        %470 = vmatprep.subr.mxu0 0.0
        %471 = vmatpush1.msra.mxu0 0.0
        %472 = vmatprep.subr.mxu0 0.0
        %473 = vmatpush1.msra.mxu0 0.0
        %474 = vmatprep.subr.mxu0 0.0
        %475 = vmatpush1.msra.mxu0 0.0
        %476 = vmatprep.subr.mxu0 0.0
        %477 = vmatpush1.msra.mxu0 0.0
        %478 = vmatprep.subr.mxu0 0.0
        %479 = vmatpush1.msra.mxu0 0.0
        %480 = vmatprep.subr.mxu0 0.0
        %481 = vmatpush1.msra.mxu0 0.0
        %482 = vmatprep.subr.mxu0 0.0
        %483 = vmatpush1.msra.mxu0 0.0
        %484 = vmatprep.subr.mxu0 0.0
        %485 = vmatpush1.msra.mxu0 0.0
        %486 = vmatprep.subr.mxu0 0.0
        %487 = vmatpush1.msra.mxu0 0.0
        %488 = vmatprep.subr.mxu0 0.0
        %489 = vmatpush1.msra.mxu0 0.0
        %490 = vmatprep.subr.mxu0 0.0
        %491 = vmatpush1.msra.mxu0 0.0
        %492 = vmatprep.subr.mxu0 0.0
        %493 = vmatpush1.msra.mxu0 0.0
        %494 = vmatprep.subr.mxu0 0.0
        %495 = vmatpush1.msra.mxu0 0.0
        %496 = vmatprep.subr.mxu0 0.0
        %497 = vmatpush1.msra.mxu0 0.0
        %498 = vmatprep.subr.mxu0 0.0
        %499 = vmatpush1.msra.mxu0 0.0
        %500 = vmatprep.subr.mxu0 0.0
        %501 = vmatpush1.msra.mxu0 0.0
        %502 = vmatprep.subr.mxu0 0.0
        %503 = vmatpush1.msra.mxu0 0.0
        %504 = vmatprep.subr.mxu0 0.0
        %505 = vmatpush1.msra.mxu0 0.0
        %506 = vmatprep.subr.mxu0 0.0
        %507 = vmatpush1.msra.mxu0 0.0
        %508 = vmatprep.subr.mxu0 0.0
        %509 = vmatpush1.msra.mxu0 0.0
        %510 = vmatprep.subr.mxu0 0.0
        %511 = vmatpush1.msra.mxu0 0.0
        %512 = vmatprep.subr.mxu0 0.0
        %513 = vmatpush1.msra.mxu0 0.0
        %514 = vmatprep.subr.mxu0 0.0
        %515 = vmatpush1.msra.mxu0 0.0
        %516 = vmatprep.subr.mxu0 0.0
        %517 = vmatpush1.msra.mxu0 0.0
        %518 = vmatprep.mubr.f32.mxu0 0.0
        %519 = vmatmul.mubr.f32.gmra.mrb[0].mxu0 %v452
        %v520 = vpop.f32.mrb[0].mxu0
        %v521 = vadd.f32 %v448, %v520
        %v522 = vpop.f32.mrb[0].mxu0
        %523 = vdwg.mxu0
        %v524 = vxor.u32 %v521, 2147483648
        %v525 = vmul.f32 %v524, 1.442695
        %v526 = vpow.pop %v525
        %v527 = vadd.f32 %v526, 1.0
        %v528 = vrcp.pop %v527
        %v529 = vmul.f32 1.0, %v528
        %v531 = vrot.slane %v529, 4
        %v533 = vadd.f32 %v529, %v531
        %v534 = vadd.f32 %v533, 1.0
        %v535 = vld [vmem:[%s3] sm:$0x1]
        %v537 = vlaneseq
        %v538 = vshrl.u32 %v537, 7
        %v539 = vsub.s32 0, %v538
        %v540 = vrot.slane %v535, %v539
        %v542 = vmul.f32 %v534, %v540
        %v543 = vlaneseq
        %v544 = vshrl.u32 %v543, 7
        %v545 = vsub.s32 0, %v544
        %v546 = vrot.slane %v542, %v545
        %548 = vbcast.lane.b32.xlu0 %v546, 256
        %v549 = vpop.permute.xlu0 %548
        %s551 = sor.u32 256, 8
        %552 = vbcast.lane.b32.xlu0 %v546, %s551
        %v553 = vpop.permute.xlu0 %552
        %v554 = vlaneseq
        %v555 = vshrl.u32 %v554, 7
        %v556 = vsub.s32 1, %v555
        %v557 = vrot.slane %v542, %v556
        %559 = vbcast.lane.b32.xlu0 %v557, 256
        %v560 = vpop.permute.xlu0 %559
        %s562 = sor.u32 256, 8
        %563 = vbcast.lane.b32.xlu0 %v557, %s562
        %v564 = vpop.permute.xlu0 %563
        %v565 = vlaneseq
        %v566 = vshrl.u32 %v565, 7
        %v567 = vsub.s32 2, %v566
        %v568 = vrot.slane %v542, %v567
        %570 = vbcast.lane.b32.xlu0 %v568, 256
        %v571 = vpop.permute.xlu0 %570
        %s573 = sor.u32 256, 8
        %574 = vbcast.lane.b32.xlu0 %v568, %s573
        %v575 = vpop.permute.xlu0 %574
        %v576 = vlaneseq
        %v577 = vshrl.u32 %v576, 7
        %v578 = vsub.s32 3, %v577
        %v579 = vrot.slane %v542, %v578
        %581 = vbcast.lane.b32.xlu0 %v579, 256
        %v582 = vpop.permute.xlu0 %581
        %s584 = sor.u32 256, 8
        %585 = vbcast.lane.b32.xlu0 %v579, %s584
        %v586 = vpop.permute.xlu0 %585
        %v587 = vmul.f32 %v261, %v549
        %v588 = vmul.f32 %v262, %v549
        %v589 = vmul.f32 %v263, %v553
        %v590 = vmul.f32 %v264, %v553
        %v591 = vmul.f32 %v265, %v560
        %v592 = vmul.f32 %v266, %v560
        %v593 = vmul.f32 %v267, %v564
        %v594 = vmul.f32 %v268, %v564
        %v595 = vmul.f32 %v269, %v571
        %v596 = vmul.f32 %v270, %v571
        %v597 = vmul.f32 %v271, %v575
        %v598 = vmul.f32 %v272, %v575
        %v599 = vmul.f32 %v273, %v582
        %v600 = vmul.f32 %v274, %v582
        %v601 = vmul.f32 %v275, %v586
        %v602 = vmul.f32 %v276, %v586
        %v603 = vld [vmem:[%s4] sm:$0x1]
        %v604 = vsel %vm439, %v587, 0.0
        %v605 = vrot.slane %v604, 4
        %v606 = vadd.f32 %v604, %v605
        %v607 = vrot.slane %v606, 2
        %v608 = vadd.f32 %v606, %v607
        %v609 = vrot.slane %v608, 1
        %v610 = vadd.f32 %v608, %v609
        %v611 = vsel %vm439, %v588, 0.0
        %v612 = vrot.slane %v611, 4
        %v613 = vadd.f32 %v611, %v612
        %v614 = vrot.slane %v613, 2
        %v615 = vadd.f32 %v613, %v614
        %v616 = vrot.slane %v615, 1
        %v617 = vadd.f32 %v615, %v616
        %v618 = vsel %vm439, %v591, 0.0
        %v619 = vrot.slane %v618, 4
        %v620 = vadd.f32 %v618, %v619
        %v621 = vrot.slane %v620, 2
        %v622 = vadd.f32 %v620, %v621
        %v623 = vrot.slane %v622, 1
        %v624 = vadd.f32 %v622, %v623
        %v625 = vsel %vm439, %v592, 0.0
        %v626 = vrot.slane %v625, 4
        %v627 = vadd.f32 %v625, %v626
        %v628 = vrot.slane %v627, 2
        %v629 = vadd.f32 %v627, %v628
        %v630 = vrot.slane %v629, 1
        %v631 = vadd.f32 %v629, %v630
        %v632 = vsel %vm439, %v595, 0.0
        %v633 = vrot.slane %v632, 4
        %v634 = vadd.f32 %v632, %v633
        %v635 = vrot.slane %v634, 2
        %v636 = vadd.f32 %v634, %v635
        %v637 = vrot.slane %v636, 1
        %v638 = vadd.f32 %v636, %v637
        %v639 = vsel %vm439, %v596, 0.0
        %v640 = vrot.slane %v639, 4
        %v641 = vadd.f32 %v639, %v640
        %v642 = vrot.slane %v641, 2
        %v643 = vadd.f32 %v641, %v642
        %v644 = vrot.slane %v643, 1
        %v645 = vadd.f32 %v643, %v644
        %v646 = vsel %vm439, %v599, 0.0
        %v647 = vrot.slane %v646, 4
        %v648 = vadd.f32 %v646, %v647
        %v649 = vrot.slane %v648, 2
        %v650 = vadd.f32 %v648, %v649
        %v651 = vrot.slane %v650, 1
        %v652 = vadd.f32 %v650, %v651
        %v653 = vsel %vm439, %v600, 0.0
        %v654 = vrot.slane %v653, 4
        %v655 = vadd.f32 %v653, %v654
        %v656 = vrot.slane %v655, 2
        %v657 = vadd.f32 %v655, %v656
        %v658 = vrot.slane %v657, 1
        %v659 = vadd.f32 %v657, %v658
        %v661 = vlaneseq
        %v662 = vshrl.u32 %v661, 7
        %v663 = vsub.s32 0, %v662
        %v664 = vrot.slane %v603, %v663
        %665 = vset.pattern.permute.xlu0 0
        %666 = vperm.xlu0 %665, %v664
        %v667 = vpop.permute.xlu0 %666
        %v669 = vadd.f32 %v610, %v667
        %v670 = vadd.f32 %v617, %v667
        %v671 = vadd.f32 %v624, %v667
        %v672 = vadd.f32 %v631, %v667
        %v673 = vadd.f32 %v638, %v667
        %v674 = vadd.f32 %v645, %v667
        %v675 = vadd.f32 %v652, %v667
        %v676 = vadd.f32 %v659, %v667
        %v685 = vcombine.low %v669, %v670
        %v687 = vunpack.c.l.s4 1966171168
        %v688 = vunpack.c.0.s8 %v687
        %v689 = vlaneseq
        %v690 = vshrl.u32 %v689, 7
        %v691 = vsub.s32 %v688, %v690
        %v692 = vrot.slane %v685, %v691
        %v694 = vunpack.c.l.s4 1966171168
        %v695 = vunpack.c.0.s8 %v694
        %v696 = vlaneseq
        %v697 = vshrl.u32 %v696, 7
        %v698 = vsub.s32 %v695, %v697
        %v699 = vrot.slane %v692, %v698
        %v700 = vcombine.low %v671, %v672
        %v702 = vunpack.c.l.s4 1966171168
        %v703 = vunpack.c.0.s8 %v702
        %v704 = vlaneseq
        %v705 = vshrl.u32 %v704, 7
        %v706 = vsub.s32 %v703, %v705
        %v707 = vrot.slane %v700, %v706
        %v709 = vunpack.c.l.s4 1966171168
        %v710 = vunpack.c.0.s8 %v709
        %v711 = vlaneseq
        %v712 = vshrl.u32 %v711, 7
        %v713 = vsub.s32 %v710, %v712
        %v714 = vrot.slane %v707, %v713
        %v715 = vcombine.low %v673, %v674
        %v717 = vunpack.c.l.s4 1966171168
        %v718 = vunpack.c.0.s8 %v717
        %v719 = vlaneseq
        %v720 = vshrl.u32 %v719, 7
        %v721 = vsub.s32 %v718, %v720
        %v722 = vrot.slane %v715, %v721
        %v724 = vunpack.c.l.s4 1966171168
        %v725 = vunpack.c.0.s8 %v724
        %v726 = vlaneseq
        %v727 = vshrl.u32 %v726, 7
        %v728 = vsub.s32 %v725, %v727
        %v729 = vrot.slane %v722, %v728
        %v730 = vcombine.low %v675, %v676
        %v732 = vunpack.c.l.s4 1966171168
        %v733 = vunpack.c.0.s8 %v732
        %v734 = vlaneseq
        %v735 = vshrl.u32 %v734, 7
        %v736 = vsub.s32 %v733, %v735
        %v737 = vrot.slane %v730, %v736
        %v739 = vunpack.c.l.s4 1966171168
        %v740 = vunpack.c.0.s8 %v739
        %v741 = vlaneseq
        %v742 = vshrl.u32 %v741, 7
        %v743 = vsub.s32 %v740, %v742
        %v744 = vrot.slane %v737, %v743
        %v749 = vlaneseq
        %vm750 = vcmp.ge.s32.totalorder %v749, 0
        %vm751 = vcmp.lt.s32.totalorder %v749, 256
        %vm752 = vmand %vm750, %vm751
        %753 = vst.msk [vmem:[%s258] ss:$4 sm:$0x3] %vm752, %v699
        %s754 = scalar_lea.vmem %s258, 8 [#allocation7]
        %755 = vst.msk [vmem:[%s754] ss:$4 sm:$0x3] %vm752, %v714
        %s756 = scalar_lea.vmem %s258, 16 [#allocation7]
        %757 = vst.msk [vmem:[%s756] ss:$4 sm:$0x3] %vm752, %v729
        %s758 = scalar_lea.vmem %s258, 24 [#allocation7]
        %759 = vst.msk [vmem:[%s758] ss:$4 sm:$0x3] %vm752, %v744
        %v768 = vrot.slane %v587, 4
        %v769 = vrot.slane %v588, 4
        %v770 = vrot.slane %v591, 4
        %v771 = vrot.slane %v592, 4
        %v772 = vrot.slane %v595, 4
        %v773 = vrot.slane %v596, 4
        %v774 = vrot.slane %v599, 4
        %v775 = vrot.slane %v600, 4
        %v784 = vsel %vm439, %v768, 0.0
        %v785 = vrot.slane %v784, 4
        %v786 = vadd.f32 %v784, %v785
        %v787 = vrot.slane %v786, 2
        %v788 = vadd.f32 %v786, %v787
        %v789 = vrot.slane %v788, 1
        %v790 = vadd.f32 %v788, %v789
        %v791 = vsel %vm439, %v769, 0.0
        %v792 = vrot.slane %v791, 4
        %v793 = vadd.f32 %v791, %v792
        %v794 = vrot.slane %v793, 2
        %v795 = vadd.f32 %v793, %v794
        %v796 = vrot.slane %v795, 1
        %v797 = vadd.f32 %v795, %v796
        %v798 = vsel %vm439, %v770, 0.0
        %v799 = vrot.slane %v798, 4
        %v800 = vadd.f32 %v798, %v799
        %v801 = vrot.slane %v800, 2
        %v802 = vadd.f32 %v800, %v801
        %v803 = vrot.slane %v802, 1
        %v804 = vadd.f32 %v802, %v803
        %v805 = vsel %vm439, %v771, 0.0
        %v806 = vrot.slane %v805, 4
        %v807 = vadd.f32 %v805, %v806
        %v808 = vrot.slane %v807, 2
        %v809 = vadd.f32 %v807, %v808
        %v810 = vrot.slane %v809, 1
        %v811 = vadd.f32 %v809, %v810
        %v812 = vsel %vm439, %v772, 0.0
        %v813 = vrot.slane %v812, 4
        %v814 = vadd.f32 %v812, %v813
        %v815 = vrot.slane %v814, 2
        %v816 = vadd.f32 %v814, %v815
        %v817 = vrot.slane %v816, 1
        %v818 = vadd.f32 %v816, %v817
        %v819 = vsel %vm439, %v773, 0.0
        %v820 = vrot.slane %v819, 4
        %v821 = vadd.f32 %v819, %v820
        %v822 = vrot.slane %v821, 2
        %v823 = vadd.f32 %v821, %v822
        %v824 = vrot.slane %v823, 1
        %v825 = vadd.f32 %v823, %v824
        %v826 = vsel %vm439, %v774, 0.0
        %v827 = vrot.slane %v826, 4
        %v828 = vadd.f32 %v826, %v827
        %v829 = vrot.slane %v828, 2
        %v830 = vadd.f32 %v828, %v829
        %v831 = vrot.slane %v830, 1
        %v832 = vadd.f32 %v830, %v831
        %v833 = vsel %vm439, %v775, 0.0
        %v834 = vrot.slane %v833, 4
        %v835 = vadd.f32 %v833, %v834
        %v836 = vrot.slane %v835, 2
        %v837 = vadd.f32 %v835, %v836
        %v838 = vrot.slane %v837, 1
        %v839 = vadd.f32 %v837, %v838
        %840 = vset.pattern.permute.xlu0 1
        %841 = vperm.xlu0 %840, %v664
        %v842 = vpop.permute.xlu0 %841
        %v844 = vadd.f32 %v790, %v842
        %v845 = vadd.f32 %v797, %v842
        %v846 = vadd.f32 %v804, %v842
        %v847 = vadd.f32 %v811, %v842
        %v848 = vadd.f32 %v818, %v842
        %v849 = vadd.f32 %v825, %v842
        %v850 = vadd.f32 %v832, %v842
        %v851 = vadd.f32 %v839, %v842
        %v860 = vcombine.low %v844, %v845
        %v862 = vunpack.c.l.s4 1966171168
        %v863 = vunpack.c.0.s8 %v862
        %v864 = vlaneseq
        %v865 = vshrl.u32 %v864, 7
        %v866 = vsub.s32 %v863, %v865
        %v867 = vrot.slane %v860, %v866
        %v869 = vunpack.c.l.s4 1966171168
        %v870 = vunpack.c.0.s8 %v869
        %v871 = vlaneseq
        %v872 = vshrl.u32 %v871, 7
        %v873 = vsub.s32 %v870, %v872
        %v874 = vrot.slane %v867, %v873
        %v875 = vcombine.low %v846, %v847
        %v877 = vunpack.c.l.s4 1966171168
        %v878 = vunpack.c.0.s8 %v877
        %v879 = vlaneseq
        %v880 = vshrl.u32 %v879, 7
        %v881 = vsub.s32 %v878, %v880
        %v882 = vrot.slane %v875, %v881
        %v884 = vunpack.c.l.s4 1966171168
        %v885 = vunpack.c.0.s8 %v884
        %v886 = vlaneseq
        %v887 = vshrl.u32 %v886, 7
        %v888 = vsub.s32 %v885, %v887
        %v889 = vrot.slane %v882, %v888
        %v890 = vcombine.low %v848, %v849
        %v892 = vunpack.c.l.s4 1966171168
        %v893 = vunpack.c.0.s8 %v892
        %v894 = vlaneseq
        %v895 = vshrl.u32 %v894, 7
        %v896 = vsub.s32 %v893, %v895
        %v897 = vrot.slane %v890, %v896
        %v899 = vunpack.c.l.s4 1966171168
        %v900 = vunpack.c.0.s8 %v899
        %v901 = vlaneseq
        %v902 = vshrl.u32 %v901, 7
        %v903 = vsub.s32 %v900, %v902
        %v904 = vrot.slane %v897, %v903
        %v905 = vcombine.low %v850, %v851
        %v907 = vunpack.c.l.s4 1966171168
        %v908 = vunpack.c.0.s8 %v907
        %v909 = vlaneseq
        %v910 = vshrl.u32 %v909, 7
        %v911 = vsub.s32 %v908, %v910
        %v912 = vrot.slane %v905, %v911
        %v914 = vunpack.c.l.s4 1966171168
        %v915 = vunpack.c.0.s8 %v914
        %v916 = vlaneseq
        %v917 = vshrl.u32 %v916, 7
        %v918 = vsub.s32 %v915, %v917
        %v919 = vrot.slane %v912, %v918
        %s924 = scalar_lea.vmem %s258, 1 [#allocation7]
        %925 = vst.msk [vmem:[%s924] ss:$4 sm:$0x3] %vm752, %v874
        %s926 = scalar_lea.vmem %s258, 9 [#allocation7]
        %927 = vst.msk [vmem:[%s926] ss:$4 sm:$0x3] %vm752, %v889
        %s928 = scalar_lea.vmem %s258, 17 [#allocation7]
        %929 = vst.msk [vmem:[%s928] ss:$4 sm:$0x3] %vm752, %v904
        %s930 = scalar_lea.vmem %s258, 25 [#allocation7]
        %931 = vst.msk [vmem:[%s930] ss:$4 sm:$0x3] %vm752, %v919
        %v932 = vsel %vm439, %v589, 0.0
        %v933 = vrot.slane %v932, 4
        %v934 = vadd.f32 %v932, %v933
        %v935 = vrot.slane %v934, 2
        %v936 = vadd.f32 %v934, %v935
        %v937 = vrot.slane %v936, 1
        %v938 = vadd.f32 %v936, %v937
        %v939 = vsel %vm439, %v590, 0.0
        %v940 = vrot.slane %v939, 4
        %v941 = vadd.f32 %v939, %v940
        %v942 = vrot.slane %v941, 2
        %v943 = vadd.f32 %v941, %v942
        %v944 = vrot.slane %v943, 1
        %v945 = vadd.f32 %v943, %v944
        %v946 = vsel %vm439, %v593, 0.0
        %v947 = vrot.slane %v946, 4
        %v948 = vadd.f32 %v946, %v947
        %v949 = vrot.slane %v948, 2
        %v950 = vadd.f32 %v948, %v949
        %v951 = vrot.slane %v950, 1
        %v952 = vadd.f32 %v950, %v951
        %v953 = vsel %vm439, %v594, 0.0
        %v954 = vrot.slane %v953, 4
        %v955 = vadd.f32 %v953, %v954
        %v956 = vrot.slane %v955, 2
        %v957 = vadd.f32 %v955, %v956
        %v958 = vrot.slane %v957, 1
        %v959 = vadd.f32 %v957, %v958
        %v960 = vsel %vm439, %v597, 0.0
        %v961 = vrot.slane %v960, 4
        %v962 = vadd.f32 %v960, %v961
        %v963 = vrot.slane %v962, 2
        %v964 = vadd.f32 %v962, %v963
        %v965 = vrot.slane %v964, 1
        %v966 = vadd.f32 %v964, %v965
        %v967 = vsel %vm439, %v598, 0.0
        %v968 = vrot.slane %v967, 4
        %v969 = vadd.f32 %v967, %v968
        %v970 = vrot.slane %v969, 2
        %v971 = vadd.f32 %v969, %v970
        %v972 = vrot.slane %v971, 1
        %v973 = vadd.f32 %v971, %v972
        %v974 = vsel %vm439, %v601, 0.0
        %v975 = vrot.slane %v974, 4
        %v976 = vadd.f32 %v974, %v975
        %v977 = vrot.slane %v976, 2
        %v978 = vadd.f32 %v976, %v977
        %v979 = vrot.slane %v978, 1
        %v980 = vadd.f32 %v978, %v979
        %v981 = vsel %vm439, %v602, 0.0
        %v982 = vrot.slane %v981, 4
        %v983 = vadd.f32 %v981, %v982
        %v984 = vrot.slane %v983, 2
        %v985 = vadd.f32 %v983, %v984
        %v986 = vrot.slane %v985, 1
        %v987 = vadd.f32 %v985, %v986
        %988 = vset.pattern.permute.xlu0 2
        %989 = vperm.xlu0 %988, %v664
        %v990 = vpop.permute.xlu0 %989
        %v992 = vadd.f32 %v938, %v990
        %v993 = vadd.f32 %v945, %v990
        %v994 = vadd.f32 %v952, %v990
        %v995 = vadd.f32 %v959, %v990
        %v996 = vadd.f32 %v966, %v990
        %v997 = vadd.f32 %v973, %v990
        %v998 = vadd.f32 %v980, %v990
        %v999 = vadd.f32 %v987, %v990
        %v1008 = vcombine.low %v992, %v993
        %v1010 = vunpack.c.l.s4 1966171168
        %v1011 = vunpack.c.0.s8 %v1010
        %v1012 = vlaneseq
        %v1013 = vshrl.u32 %v1012, 7
        %v1014 = vsub.s32 %v1011, %v1013
        %v1015 = vrot.slane %v1008, %v1014
        %v1017 = vunpack.c.l.s4 1966171168
        %v1018 = vunpack.c.0.s8 %v1017
        %v1019 = vlaneseq
        %v1020 = vshrl.u32 %v1019, 7
        %v1021 = vsub.s32 %v1018, %v1020
        %v1022 = vrot.slane %v1015, %v1021
        %v1023 = vcombine.low %v994, %v995
        %v1025 = vunpack.c.l.s4 1966171168
        %v1026 = vunpack.c.0.s8 %v1025
        %v1027 = vlaneseq
        %v1028 = vshrl.u32 %v1027, 7
        %v1029 = vsub.s32 %v1026, %v1028
        %v1030 = vrot.slane %v1023, %v1029
        %v1032 = vunpack.c.l.s4 1966171168
        %v1033 = vunpack.c.0.s8 %v1032
        %v1034 = vlaneseq
        %v1035 = vshrl.u32 %v1034, 7
        %v1036 = vsub.s32 %v1033, %v1035
        %v1037 = vrot.slane %v1030, %v1036
        %v1038 = vcombine.low %v996, %v997
        %v1040 = vunpack.c.l.s4 1966171168
        %v1041 = vunpack.c.0.s8 %v1040
        %v1042 = vlaneseq
        %v1043 = vshrl.u32 %v1042, 7
        %v1044 = vsub.s32 %v1041, %v1043
        %v1045 = vrot.slane %v1038, %v1044
        %v1047 = vunpack.c.l.s4 1966171168
        %v1048 = vunpack.c.0.s8 %v1047
        %v1049 = vlaneseq
        %v1050 = vshrl.u32 %v1049, 7
        %v1051 = vsub.s32 %v1048, %v1050
        %v1052 = vrot.slane %v1045, %v1051
        %v1053 = vcombine.low %v998, %v999
        %v1055 = vunpack.c.l.s4 1966171168
        %v1056 = vunpack.c.0.s8 %v1055
        %v1057 = vlaneseq
        %v1058 = vshrl.u32 %v1057, 7
        %v1059 = vsub.s32 %v1056, %v1058
        %v1060 = vrot.slane %v1053, %v1059
        %v1062 = vunpack.c.l.s4 1966171168
        %v1063 = vunpack.c.0.s8 %v1062
        %v1064 = vlaneseq
        %v1065 = vshrl.u32 %v1064, 7
        %v1066 = vsub.s32 %v1063, %v1065
        %v1067 = vrot.slane %v1060, %v1066
        %s1072 = scalar_lea.vmem %s258, 2 [#allocation7]
        %1073 = vst.msk [vmem:[%s1072] ss:$4 sm:$0x3] %vm752, %v1022
        %s1074 = scalar_lea.vmem %s258, 10 [#allocation7]
        %1075 = vst.msk [vmem:[%s1074] ss:$4 sm:$0x3] %vm752, %v1037
        %s1076 = scalar_lea.vmem %s258, 18 [#allocation7]
        %1077 = vst.msk [vmem:[%s1076] ss:$4 sm:$0x3] %vm752, %v1052
        %s1078 = scalar_lea.vmem %s258, 26 [#allocation7]
        %1079 = vst.msk [vmem:[%s1078] ss:$4 sm:$0x3] %vm752, %v1067
        %v1088 = vrot.slane %v589, 4
        %v1089 = vrot.slane %v590, 4
        %v1090 = vrot.slane %v593, 4
        %v1091 = vrot.slane %v594, 4
        %v1092 = vrot.slane %v597, 4
        %v1093 = vrot.slane %v598, 4
        %v1094 = vrot.slane %v601, 4
        %v1095 = vrot.slane %v602, 4
        %v1104 = vsel %vm439, %v1088, 0.0
        %v1105 = vrot.slane %v1104, 4
        %v1106 = vadd.f32 %v1104, %v1105
        %v1107 = vrot.slane %v1106, 2
        %v1108 = vadd.f32 %v1106, %v1107
        %v1109 = vrot.slane %v1108, 1
        %v1110 = vadd.f32 %v1108, %v1109
        %v1111 = vsel %vm439, %v1089, 0.0
        %v1112 = vrot.slane %v1111, 4
        %v1113 = vadd.f32 %v1111, %v1112
        %v1114 = vrot.slane %v1113, 2
        %v1115 = vadd.f32 %v1113, %v1114
        %v1116 = vrot.slane %v1115, 1
        %v1117 = vadd.f32 %v1115, %v1116
        %v1118 = vsel %vm439, %v1090, 0.0
        %v1119 = vrot.slane %v1118, 4
        %v1120 = vadd.f32 %v1118, %v1119
        %v1121 = vrot.slane %v1120, 2
        %v1122 = vadd.f32 %v1120, %v1121
        %v1123 = vrot.slane %v1122, 1
        %v1124 = vadd.f32 %v1122, %v1123
        %v1125 = vsel %vm439, %v1091, 0.0
        %v1126 = vrot.slane %v1125, 4
        %v1127 = vadd.f32 %v1125, %v1126
        %v1128 = vrot.slane %v1127, 2
        %v1129 = vadd.f32 %v1127, %v1128
        %v1130 = vrot.slane %v1129, 1
        %v1131 = vadd.f32 %v1129, %v1130
        %v1132 = vsel %vm439, %v1092, 0.0
        %v1133 = vrot.slane %v1132, 4
        %v1134 = vadd.f32 %v1132, %v1133
        %v1135 = vrot.slane %v1134, 2
        %v1136 = vadd.f32 %v1134, %v1135
        %v1137 = vrot.slane %v1136, 1
        %v1138 = vadd.f32 %v1136, %v1137
        %v1139 = vsel %vm439, %v1093, 0.0
        %v1140 = vrot.slane %v1139, 4
        %v1141 = vadd.f32 %v1139, %v1140
        %v1142 = vrot.slane %v1141, 2
        %v1143 = vadd.f32 %v1141, %v1142
        %v1144 = vrot.slane %v1143, 1
        %v1145 = vadd.f32 %v1143, %v1144
        %v1146 = vsel %vm439, %v1094, 0.0
        %v1147 = vrot.slane %v1146, 4
        %v1148 = vadd.f32 %v1146, %v1147
        %v1149 = vrot.slane %v1148, 2
        %v1150 = vadd.f32 %v1148, %v1149
        %v1151 = vrot.slane %v1150, 1
        %v1152 = vadd.f32 %v1150, %v1151
        %v1153 = vsel %vm439, %v1095, 0.0
        %v1154 = vrot.slane %v1153, 4
        %v1155 = vadd.f32 %v1153, %v1154
        %v1156 = vrot.slane %v1155, 2
        %v1157 = vadd.f32 %v1155, %v1156
        %v1158 = vrot.slane %v1157, 1
        %v1159 = vadd.f32 %v1157, %v1158
        %1160 = vset.pattern.permute.xlu0 3
        %1161 = vperm.xlu0 %1160, %v664
        %v1162 = vpop.permute.xlu0 %1161
        %v1164 = vadd.f32 %v1110, %v1162
        %v1165 = vadd.f32 %v1117, %v1162
        %v1166 = vadd.f32 %v1124, %v1162
        %v1167 = vadd.f32 %v1131, %v1162
        %v1168 = vadd.f32 %v1138, %v1162
        %v1169 = vadd.f32 %v1145, %v1162
        %v1170 = vadd.f32 %v1152, %v1162
        %v1171 = vadd.f32 %v1159, %v1162
        %v1180 = vcombine.low %v1164, %v1165
        %v1182 = vunpack.c.l.s4 1966171168
        %v1183 = vunpack.c.0.s8 %v1182
        %v1184 = vlaneseq
        %v1185 = vshrl.u32 %v1184, 7
        %v1186 = vsub.s32 %v1183, %v1185
        %v1187 = vrot.slane %v1180, %v1186
        %v1189 = vunpack.c.l.s4 1966171168
        %v1190 = vunpack.c.0.s8 %v1189
        %v1191 = vlaneseq
        %v1192 = vshrl.u32 %v1191, 7
        %v1193 = vsub.s32 %v1190, %v1192
        %v1194 = vrot.slane %v1187, %v1193
        %v1195 = vcombine.low %v1166, %v1167
        %v1197 = vunpack.c.l.s4 1966171168
        %v1198 = vunpack.c.0.s8 %v1197
        %v1199 = vlaneseq
        %v1200 = vshrl.u32 %v1199, 7
        %v1201 = vsub.s32 %v1198, %v1200
        %v1202 = vrot.slane %v1195, %v1201
        %v1204 = vunpack.c.l.s4 1966171168
        %v1205 = vunpack.c.0.s8 %v1204
        %v1206 = vlaneseq
        %v1207 = vshrl.u32 %v1206, 7
        %v1208 = vsub.s32 %v1205, %v1207
        %v1209 = vrot.slane %v1202, %v1208
        %v1210 = vcombine.low %v1168, %v1169
        %v1212 = vunpack.c.l.s4 1966171168
        %v1213 = vunpack.c.0.s8 %v1212
        %v1214 = vlaneseq
        %v1215 = vshrl.u32 %v1214, 7
        %v1216 = vsub.s32 %v1213, %v1215
        %v1217 = vrot.slane %v1210, %v1216
        %v1219 = vunpack.c.l.s4 1966171168
        %v1220 = vunpack.c.0.s8 %v1219
        %v1221 = vlaneseq
        %v1222 = vshrl.u32 %v1221, 7
        %v1223 = vsub.s32 %v1220, %v1222
        %v1224 = vrot.slane %v1217, %v1223
        %v1225 = vcombine.low %v1170, %v1171
        %v1227 = vunpack.c.l.s4 1966171168
        %v1228 = vunpack.c.0.s8 %v1227
        %v1229 = vlaneseq
        %v1230 = vshrl.u32 %v1229, 7
        %v1231 = vsub.s32 %v1228, %v1230
        %v1232 = vrot.slane %v1225, %v1231
        %v1234 = vunpack.c.l.s4 1966171168
        %v1235 = vunpack.c.0.s8 %v1234
        %v1236 = vlaneseq
        %v1237 = vshrl.u32 %v1236, 7
        %v1238 = vsub.s32 %v1235, %v1237
        %v1239 = vrot.slane %v1232, %v1238
        %s1244 = scalar_lea.vmem %s258, 3 [#allocation7]
        %1245 = vst.msk [vmem:[%s1244] ss:$4 sm:$0x3] %vm752, %v1194
        %s1246 = scalar_lea.vmem %s258, 11 [#allocation7]
        %1247 = vst.msk [vmem:[%s1246] ss:$4 sm:$0x3] %vm752, %v1209
        %s1248 = scalar_lea.vmem %s258, 19 [#allocation7]
        %1249 = vst.msk [vmem:[%s1248] ss:$4 sm:$0x3] %vm752, %v1224
        %s1250 = scalar_lea.vmem %s258, 27 [#allocation7]
        %1251 = vst.msk [vmem:[%s1250] ss:$4 sm:$0x3] %vm752, %v1239
        %s1252 = sand.u32 %s141, 1
        %s1253 = scalar_lea.sflag [#allocation4], %s1252
        %s1254 = sand.u32 %s141, 1
        %s1255 = smul.addr %s1254, 32
        %s1256 = scalar_lea.vmem [#allocation7], %s1255
        // Predicated region
        $region49: #{tpu_custom_call.1} parent=39 // pred_check
          %p1257 = pneg %p151
        $region50: #{tpu_custom_call.1} parent=39 // pred_check_branch
          %1259 = sbr.rel (%p1257) target = $region52
        $region51: #{tpu_custom_call.1} parent=39 // pred_region
          %s1260 = smul.u32 4, %s23
          %s1262 = ssub.s32 512, 512
          %1263 = vsyncadd %s1253, %s1262
          %s1264 = smul.addr %s1260, 2
          %s1265 = smul.addr %s1264, 64
          %s1266 = scalar_lea.hbm %s5, %s1265
          %s1267 = sshll.u32 %s1256, 4
          %s1268 = int_to_ptr.vmem [resolvable:$true] %s1267
          %1273 = dma.vmem_to_hbm [thread:$0]  %s1268, 512, %s1266, %s1253, 128, 128, 8
        $region52: #{tpu_custom_call.1} parent=39 // pred_fallthru
          _
      $region40: #{tpu_custom_call.1} parent=5 // pred_fallthru
        _
      %p1274 = scmp.le.s32.totalorder 2, %s18
      // Predicated region
      $region53: #{tpu_custom_call.1} parent=5 // pred_check
        %p1275 = pneg %p1274
      $region54: #{tpu_custom_call.1} parent=5 // pred_check_branch
        %1277 = sbr.rel (%p1275) target = $region56
      $region55: #{tpu_custom_call.1} parent=5 // pred_region
        %s1278 = ssub.s32 %s18, 2
        // Predicated region
        $region57: #{tpu_custom_call.1} parent=55 // pred_check
          %p1279 = pneg %p157
        $region58: #{tpu_custom_call.1} parent=55 // pred_check_branch
          %1281 = sbr.rel (%p1279) target = $region60
        $region59: #{tpu_custom_call.1} parent=55 // pred_region
          %s1282 = sand.u32 %s142, 1
          %s1283 = scalar_lea.sflag [#allocation4], %s1282
          %s1284 = sand.u32 %s142, 1
          %s1285 = smul.addr %s1284, 32
          %s1286 = scalar_lea.vmem [#allocation7], %s1285
          %1287 = dma.done %s1283, 512
        $region60: #{tpu_custom_call.1} parent=55 // pred_fallthru
          _
      $region56: #{tpu_custom_call.1} parent=5 // pred_fallthru
        _
    $region6: #{tpu_custom_call.1} parent=1 // loop_footer
      %s22 = sadd.s32 1, %s18
    $region7: #{tpu_custom_call.1} parent=1 // loop_footer_branch
      %17 = sbr.rel target = $region3
    $region8: #{tpu_custom_call.1} parent=1 // loop_exit
      _
    %1288 = vsyncpa [#allocation3], 1
    %s1289 = scalar_lea.sflag [#allocation3], 1
    %1290 = vsyncpa %s1289, 1
    %1291 = vsyncpa [#allocation6], 1
    %1292 = vsyncpa [#allocation4], 1
    %s1293 = scalar_lea.sflag [#allocation4], 1
    %1294 = vsyncpa %s1293, 1

</llo_original>
